<compile_context>
chip_gen: v6e
topology: v6e:2x2x1
jax: 0.10.0
libtpu: 0.0.40
codegen_flags: <defaults>
</compile_context>

<pallas_src>
import functools
import math

import jax
import jax.numpy as jnp
import numpy as np
from jax import lax
from jax.experimental import pallas as pl
from jax.experimental.pallas import tpu as pltpu


def _segment_signature_kernel(x_ref, out_ref, *, num_segments, segment_len,
                              include_startpoint):
    S, L = num_segments, segment_len
    bt, C, F = x_ref.shape
    T = F - 1                                    # number of raw increments

    # ---- constant 0/1 indicator matrices, built on the VPU from iota ------
    # start_ind[t, s] = 1 iff frame t is the first frame of segment s
    t_f = lax.broadcasted_iota(jnp.int32, (F, S), 0)
    s_f = lax.broadcasted_iota(jnp.int32, (F, S), 1)
    start_ind = (t_f == jnp.minimum(s_f * L, F - 1)).astype(jnp.float32)

    use_sig = (T > 0) and (L > 1)                # static
    if use_sig:
        # seg_ind[t, s] = 1 iff increment t (between frames t, t+1) belongs to
        # segment s.  Boundary-crossing increments and the replicated-pad
        # region are excluded (their columns are simply never selected).
        t_i = lax.broadcasted_iota(jnp.int32, (T, S), 0)
        s_i = lax.broadcasted_iota(jnp.int32, (T, S), 1)
        seg_ind = ((t_i >= s_i * L) &
                   (t_i <= s_i * L + (L - 2))).astype(jnp.float32)      # (T, S)
        # transposed membership: broadcasts each segment's start point back
        # onto its own increments without any in-kernel transpose.
        s_r = lax.broadcasted_iota(jnp.int32, (S, T), 0)
        t_c = lax.broadcasted_iota(jnp.int32, (S, T), 1)
        memb_t = ((t_c >= s_r * L) &
                  (t_c <= s_r * L + (L - 2))).astype(jnp.float32)       # (S, T)

    for i in range(bt):                          # static unroll over batch block
        y = x_ref[i].astype(jnp.float32)         # (C, F); upcast at load (bf16-safe)

        # segment start points: sp[c, s] = y[c, s*L]   (clamped for safety)
        sp = jnp.dot(y, start_ind, preferred_element_type=jnp.float32)  # (C, S)

        if use_sig:
            d = y[:, 1:] - y[:, :-1]                       # increments (C, T)
            mid = 0.5 * (y[:, 1:] + y[:, :-1])             # midpoints  (C, T)
            # start point of the segment each increment lives in, on the time axis
            startbc = jnp.dot(sp, memb_t, preferred_element_type=jnp.float32)
            mc = mid - startbc                             # == p + d/2   (C, T)

            # fused LHS slab [ d ; mc[0]*d ; ... ; mc[C-1]*d ]  -> (C + C^2, T);
            # one MXU contraction over time yields level-1 and level-2 at once.
            rows = [d] + [mc[a:a + 1, :] * d for a in range(C)]
            g = jnp.concatenate(rows, axis=0)
            gs = jnp.dot(g, seg_ind, preferred_element_type=jnp.float32)  # (C+C^2, S)
        else:
            # length-1 segment paths: every (log)signature term is zero.
            gs = jnp.zeros((C + C * C, S), jnp.float32)

        out_i = jnp.concatenate([gs, sp], axis=0) if include_startpoint else gs
        out_ref[i] = out_i.astype(out_ref.dtype)


def _pick_batch_block(batch, channels, frames, num_segments, out_channels,
                      vmem_budget_bytes=6 * 1024 * 1024):
    """Largest batch-block that (a) divides batch, (b) fits a conservative VMEM
    budget incl. double-buffered I/O tiles, (c) keeps >=2 grid steps when
    possible (both v7x TensorCores fed), (d) keeps the static unroll small."""
    C, F, S = channels, frames, num_segments
    per_item = 4 * (
        2 * C * F                      # double-buffered input tile
        + 2 * out_channels * S         # double-buffered output tile
        + 5 * C * F                    # y(f32), d, mid, mc, startbc
        + (C + C * C) * F              # fused [d ; mc*d] slab
        + 2 * (C + C * C + C) * S)     # gs, sp, out value
    best = 1
    for bt in range(1, batch + 1):
        if batch % bt or bt > 8:
            continue
        if bt * per_item > vmem_budget_bytes:
            continue
        if batch >= 2 and batch // bt < 2:
            continue
        best = bt
    return best


def segment_signatures(x, *, num_segments=None, segment_len=None,
                       include_startpoint=False):
    """x: (batch, in_channels, frames) -> (batch, out_channels, num_segments)."""
    if num_segments is None and segment_len is None:
        raise ValueError("Either number of segments or segment length must be "
                         "specified.")
    batch, C, frames = x.shape
    if num_segments is not None:
        S = int(num_segments)
        L = int(math.ceil(frames / S))
    else:
        L = int(segment_len)
        S = int(math.ceil(frames / L))
    out_channels = C + C * C + (C if include_startpoint else 0)

    bt = _pick_batch_block(batch, C, frames, S, out_channels)
    grid = (batch // bt,)

    kernel = functools.partial(
        _segment_signature_kernel,
        num_segments=S, segment_len=L, include_startpoint=include_startpoint)

    return pl.pallas_call(
        kernel,
        out_shape=jax.ShapeDtypeStruct((batch, out_channels, S), x.dtype),
        grid=grid,
        in_specs=[pl.BlockSpec((bt, C, frames), lambda b: (b, 0, 0))],
        out_specs=pl.BlockSpec((bt, out_channels, S), lambda b: (b, 0, 0)),
        compiler_params=pltpu.CompilerParams(
            dimension_semantics=("parallel",)),
    )(x)


def _reference_numpy(x, num_segments=None, segment_len=None,
                     include_startpoint=False):
    """Independent reference: iterative Chen product per segment (float64)."""
    x = np.asarray(x, dtype=np.float64)
    batch, channels, frames = x.shape
    xt = np.transpose(x, (0, 2, 1))
    if num_segments is not None:
        S = num_segments
        L = int(math.ceil(frames / S))
    else:
        L = segment_len
        S = int(math.ceil(frames / L))
    pad_len = (L - frames % L) % L
    if pad_len:
        xt = np.concatenate([xt, np.repeat(xt[:, -1:, :], pad_len, axis=1)],
                            axis=1)
    xs = xt.reshape(batch * S, L, channels)
    sig_ch = channels + channels * channels
    sigs = np.zeros((xs.shape[0], sig_ch))
    for n in range(xs.shape[0]):
        s1 = np.zeros(channels)
        s2 = np.zeros((channels, channels))
        for t in range(L - 1):
            v = xs[n, t + 1] - xs[n, t]
            s2 = s2 + np.outer(s1, v) + 0.5 * np.outer(v, v)
            s1 = s1 + v
        sigs[n] = np.concatenate([s1, s2.reshape(-1)])
    sigs = sigs.reshape(batch, S, sig_ch)
    if include_startpoint:
        starts = xs.reshape(batch, S, L, channels)[:, :, 0, :]
        sigs = np.concatenate([sigs, starts], axis=-1)
    return np.transpose(sigs, (0, 2, 1))


if __name__ == "__main__":
    k1, k2 = jax.random.split(jax.random.PRNGKey(0))

    # config 1: num_segments given, frames not divisible (exercises the
    # replicate-last-frame padding), include_startpoint=True.
    batch, C, frames, num_segments = 2, 8, 15, 4
    x1 = jax.random.normal(k1, (batch, C, frames), dtype=jnp.float32)
    out1 = jax.block_until_ready(
        segment_signatures(x1, num_segments=num_segments,
                           include_startpoint=True))
    assert out1.shape == (batch, C + C * C + C, num_segments), out1.shape
    ref1 = _reference_numpy(np.asarray(x1), num_segments=num_segments,
                            include_startpoint=True)
    np.testing.assert_allclose(np.asarray(out1), ref1, rtol=2e-4, atol=2e-4)

    # config 2: segment_len given instead, no start point, larger C.
    batch2, C2, frames2, seg_len = 3, 16, 26, 6
    x2 = jax.random.normal(k2, (batch2, C2, frames2), dtype=jnp.float32)
    out2 = jax.block_until_ready(
        segment_signatures(x2, segment_len=seg_len, include_startpoint=False))
    S2 = int(math.ceil(frames2 / seg_len))
    assert out2.shape == (batch2, C2 + C2 * C2, S2), out2.shape
    ref2 = _reference_numpy(np.asarray(x2), segment_len=seg_len,
                            include_startpoint=False)
    np.testing.assert_allclose(np.asarray(out2), ref2, rtol=2e-4, atol=2e-4)

    print("KERNEL_OK")
</pallas_src>

<mosaic_0001>
module attributes {stable_mosaic.version = 11 : i64} {
  func.func @_segment_signature_kernel(%arg0: i32, %arg1: memref<1x8x15xf32, #tpu.memory_space<vmem>>, %arg2: memref<1x80x4xf32, #tpu.memory_space<vmem>>) attributes {dimension_semantics = [#tpu.dimension_semantics<parallel>], iteration_bounds = array<i64: 2>, scalar_prefetch = 0 : i64, scratch_operands = 0 : i64, tpu.core_type = #tpu.core_type<tc>, window_params = [{transform_indices = @transform_0, window_bounds = array<i64: 1, 8, 15>}, {transform_indices = @transform_1, window_bounds = array<i64: 1, 80, 4>}]} {
    %0 = tpu.iota {dimensions = array<i32: 0>} : vector<15x4xi32>
    %1 = tpu.iota {dimensions = array<i32: 1>} : vector<15x4xi32>
    %c4_i32 = arith.constant 4 : i32
    %2 = vector.broadcast %c4_i32 : i32 to vector<15x4xi32>
    %3 = arith.muli %1, %2 : vector<15x4xi32>
    %c14_i32 = arith.constant 14 : i32
    %4 = vector.broadcast %c14_i32 : i32 to vector<15x4xi32>
    %5 = arith.minsi %3, %4 : vector<15x4xi32>
    %6 = arith.cmpi eq, %0, %5 : vector<15x4xi32>
    %7 = arith.extui %6 : vector<15x4xi1> to vector<15x4xi32>
    %8 = arith.sitofp %7 : vector<15x4xi32> to vector<15x4xf32>
    %9 = tpu.iota {dimensions = array<i32: 0>} : vector<14x4xi32>
    %10 = tpu.iota {dimensions = array<i32: 1>} : vector<14x4xi32>
    %c4_i32_0 = arith.constant 4 : i32
    %11 = vector.broadcast %c4_i32_0 : i32 to vector<14x4xi32>
    %12 = arith.muli %10, %11 : vector<14x4xi32>
    %13 = arith.cmpi sge, %9, %12 : vector<14x4xi32>
    %c4_i32_1 = arith.constant 4 : i32
    %14 = vector.broadcast %c4_i32_1 : i32 to vector<14x4xi32>
    %15 = arith.muli %10, %14 : vector<14x4xi32>
    %c2_i32 = arith.constant 2 : i32
    %16 = vector.broadcast %c2_i32 : i32 to vector<14x4xi32>
    %17 = arith.addi %15, %16 : vector<14x4xi32>
    %18 = arith.cmpi sle, %9, %17 : vector<14x4xi32>
    %19 = arith.andi %13, %18 : vector<14x4xi1>
    %20 = arith.extui %19 : vector<14x4xi1> to vector<14x4xi32>
    %21 = arith.sitofp %20 : vector<14x4xi32> to vector<14x4xf32>
    %22 = tpu.iota {dimensions = array<i32: 0>} : vector<4x14xi32>
    %23 = tpu.iota {dimensions = array<i32: 1>} : vector<4x14xi32>
    %c4_i32_2 = arith.constant 4 : i32
    %24 = vector.broadcast %c4_i32_2 : i32 to vector<4x14xi32>
    %25 = arith.muli %22, %24 : vector<4x14xi32>
    %26 = arith.cmpi sge, %23, %25 : vector<4x14xi32>
    %c4_i32_3 = arith.constant 4 : i32
    %27 = vector.broadcast %c4_i32_3 : i32 to vector<4x14xi32>
    %28 = arith.muli %22, %27 : vector<4x14xi32>
    %c2_i32_4 = arith.constant 2 : i32
    %29 = vector.broadcast %c2_i32_4 : i32 to vector<4x14xi32>
    %30 = arith.addi %28, %29 : vector<4x14xi32>
    %31 = arith.cmpi sle, %23, %30 : vector<4x14xi32>
    %32 = arith.andi %26, %31 : vector<4x14xi1>
    %33 = arith.extui %32 : vector<4x14xi1> to vector<4x14xi32>
    %34 = arith.sitofp %33 : vector<4x14xi32> to vector<4x14xf32>
    %c0 = arith.constant 0 : index
    %c0_5 = arith.constant 0 : index
    %c0_6 = arith.constant 0 : index
    %35 = vector.load %arg1[%c0, %c0_5, %c0_6] : memref<1x8x15xf32, #tpu.memory_space<vmem>>, vector<1x8x15xf32>
    %36 = vector.shape_cast %35 : vector<1x8x15xf32> to vector<8x15xf32>
    %cst = arith.constant dense<0.000000e+00> : vector<8x4xf32>
    %37 = tpu.matmul %36, %8, %cst {dimension_numbers = #tpu.dot_dimension_numbers<[1], [0], [0], [1], [0, 0, 1, 1], [], []>} : vector<8x15xf32>, vector<15x4xf32>, vector<8x4xf32> -> vector<8x4xf32>
    %38 = vector.extract_strided_slice %36 {offsets = [0, 1], sizes = [8, 14], strides = [1, 1]} : vector<8x15xf32> to vector<8x14xf32>
    %39 = vector.extract_strided_slice %36 {offsets = [0, 0], sizes = [8, 14], strides = [1, 1]} : vector<8x15xf32> to vector<8x14xf32>
    %40 = arith.subf %38, %39 : vector<8x14xf32>
    %41 = vector.extract_strided_slice %36 {offsets = [0, 1], sizes = [8, 14], strides = [1, 1]} : vector<8x15xf32> to vector<8x14xf32>
    %42 = vector.extract_strided_slice %36 {offsets = [0, 0], sizes = [8, 14], strides = [1, 1]} : vector<8x15xf32> to vector<8x14xf32>
    %43 = arith.addf %41, %42 : vector<8x14xf32>
    %cst_7 = arith.constant 5.000000e-01 : f32
    %44 = vector.broadcast %cst_7 : f32 to vector<8x14xf32>
    %45 = arith.mulf %44, %43 : vector<8x14xf32>
    %cst_8 = arith.constant dense<0.000000e+00> : vector<8x14xf32>
    %46 = tpu.matmul %37, %34, %cst_8 {dimension_numbers = #tpu.dot_dimension_numbers<[1], [0], [0], [1], [0, 0, 1, 1], [], []>} : vector<8x4xf32>, vector<4x14xf32>, vector<8x14xf32> -> vector<8x14xf32>
    %47 = arith.subf %45, %46 : vector<8x14xf32>
    %48 = vector.extract_strided_slice %47 {offsets = [0, 0], sizes = [1, 14], strides = [1, 1]} : vector<8x14xf32> to vector<1x14xf32>
    %49 = vector.broadcast %48 : vector<1x14xf32> to vector<8x14xf32>
    %50 = arith.mulf %49, %40 : vector<8x14xf32>
    %51 = vector.extract_strided_slice %47 {offsets = [1, 0], sizes = [1, 14], strides = [1, 1]} : vector<8x14xf32> to vector<1x14xf32>
    %52 = vector.broadcast %51 : vector<1x14xf32> to vector<8x14xf32>
    %53 = arith.mulf %52, %40 : vector<8x14xf32>
    %54 = vector.extract_strided_slice %47 {offsets = [2, 0], sizes = [1, 14], strides = [1, 1]} : vector<8x14xf32> to vector<1x14xf32>
    %55 = vector.broadcast %54 : vector<1x14xf32> to vector<8x14xf32>
    %56 = arith.mulf %55, %40 : vector<8x14xf32>
    %57 = vector.extract_strided_slice %47 {offsets = [3, 0], sizes = [1, 14], strides = [1, 1]} : vector<8x14xf32> to vector<1x14xf32>
    %58 = vector.broadcast %57 : vector<1x14xf32> to vector<8x14xf32>
    %59 = arith.mulf %58, %40 : vector<8x14xf32>
    %60 = vector.extract_strided_slice %47 {offsets = [4, 0], sizes = [1, 14], strides = [1, 1]} : vector<8x14xf32> to vector<1x14xf32>
    %61 = vector.broadcast %60 : vector<1x14xf32> to vector<8x14xf32>
    %62 = arith.mulf %61, %40 : vector<8x14xf32>
    %63 = vector.extract_strided_slice %47 {offsets = [5, 0], sizes = [1, 14], strides = [1, 1]} : vector<8x14xf32> to vector<1x14xf32>
    %64 = vector.broadcast %63 : vector<1x14xf32> to vector<8x14xf32>
    %65 = arith.mulf %64, %40 : vector<8x14xf32>
    %66 = vector.extract_strided_slice %47 {offsets = [6, 0], sizes = [1, 14], strides = [1, 1]} : vector<8x14xf32> to vector<1x14xf32>
    %67 = vector.broadcast %66 : vector<1x14xf32> to vector<8x14xf32>
    %68 = arith.mulf %67, %40 : vector<8x14xf32>
    %69 = vector.extract_strided_slice %47 {offsets = [7, 0], sizes = [1, 14], strides = [1, 1]} : vector<8x14xf32> to vector<1x14xf32>
    %70 = vector.broadcast %69 : vector<1x14xf32> to vector<8x14xf32>
    %71 = arith.mulf %70, %40 : vector<8x14xf32>
    %72 = tpu.concatenate %40, %50, %53, %56, %59, %62, %65, %68, %71 in 0 : vector<8x14xf32>, vector<8x14xf32>, vector<8x14xf32>, vector<8x14xf32>, vector<8x14xf32>, vector<8x14xf32>, vector<8x14xf32>, vector<8x14xf32>, vector<8x14xf32> -> vector<72x14xf32>
    %cst_9 = arith.constant dense<0.000000e+00> : vector<72x4xf32>
    %73 = tpu.matmul %72, %21, %cst_9 {dimension_numbers = #tpu.dot_dimension_numbers<[1], [0], [0], [1], [0, 0, 1, 1], [], []>} : vector<72x14xf32>, vector<14x4xf32>, vector<72x4xf32> -> vector<72x4xf32>
    %74 = tpu.concatenate %73, %37 in 0 : vector<72x4xf32>, vector<8x4xf32> -> vector<80x4xf32>
    %c0_10 = arith.constant 0 : index
    %c0_11 = arith.constant 0 : index
    %c0_12 = arith.constant 0 : index
    %75 = vector.load %arg2[%c0_10, %c0_11, %c0_12] : memref<1x80x4xf32, #tpu.memory_space<vmem>>, vector<1x80x4xf32>
    %76 = vector.shape_cast %75 : vector<1x80x4xf32> to vector<80x4xf32>
    %77 = vector.shape_cast %74 : vector<80x4xf32> to vector<1x80x4xf32>
    tpu.vector_store %arg2[%c0_10, %c0_11, %c0_12], %77 {strides = array<i32>} : memref<1x80x4xf32, #tpu.memory_space<vmem>>, vector<1x80x4xf32>,
    return
  }
  func.func @transform_0(%arg0: i32) -> (i32, i32, i32) {
    %c0_i32 = arith.constant 0 : i32
    %c0_i32_0 = arith.constant 0 : i32
    %c0_i32_1 = arith.constant 0 : i32
    return %arg0, %c0_i32, %c0_i32_0 : i32, i32, i32
  }
  func.func @transform_1(%arg0: i32) -> (i32, i32, i32) {
    %c0_i32 = arith.constant 0 : i32
    %c0_i32_0 = arith.constant 0 : i32
    %c0_i32_1 = arith.constant 0 : i32
    return %arg0, %c0_i32, %c0_i32_0 : i32, i32, i32
  }
}

</mosaic_0001>

<llo_original>
// kernel: tpu_custom_call.1
$region0: #{tpu_custom_call.1}
  #allocation0 [shape = 'u32[]', space=smem, size = 0x4, offset = 0x4, fixed_abs, tag = 'smem constant byte address 0x4 - core index']
  #allocation1 [shape = 'u32[144,128]{1,0:T(1,128)}', space=vmem, size = 0x12000, scoped, tag = 'internal scratch']
  %s0 = inlined_call_operand.hbm [shape: f32[2,8,15], index: 0, kind: input, shape index: {}]
  %s1 = inlined_call_operand.vmem [shape: f32[2,80,4], index: 1, kind: output, shape index: {}]
  %s2 = sld [smem:[#allocation0]]
  $region41: #{tpu_custom_call.1} parent=0
    _
  %s4 = ssub.s32 1, %s2
  %s5 = scalar_select 0, %s4, %s2
  $region1: #{tpu_custom_call.1} parent=0
    #allocation2 [shape = 'u8[8192]{0}', space=vmem, size = 0x2000, scoped, tag = 'input window, operand 0']
    #allocation3 [shape = 's32[2]{0}', space=sflag, size = 0x8, scoped, tag = 'scoped memory for tpu_custom_call.1']
    %6 = vsyncpa [#allocation3], 0
    %s7 = scalar_lea.sflag [#allocation3], 1
    %8 = vsyncpa %s7, 0
    loop: start=0, step=1, limit=4
    $region2: #{tpu_custom_call.1} parent=1 // loop_pre_header
      _
    $region3: #{tpu_custom_call.1} parent=1 // loop_header
      %s10 = sphi 0, %s14
      %p11 = scmp.ge.s32.totalorder %s10, 4
      %s20 = sphi 0, %s22
      %s23 = sphi 0, %s20
      %s24 = sphi 0, %s23
      %s40 = sphi 0, %s24
      %s46 = sphi 0, %s48
      %s49 = sphi 0, %s46
      %s50 = sphi 0, %s49
      %s66 = sphi 0, %s50
    $region4: #{tpu_custom_call.1} parent=1 // loop_header_branch
      %13 = sbr.rel (%p11) target = $region8
    $region5: #{tpu_custom_call.1} parent=1 // loop_body
      %s15 = ssub.s32 %s10, 1
      %s16 = ssub.s32 %s10, 2
      %s17 = sadd.s32 %s10, 1
      %s18 = ssub.s32 %s10, %s17
      %p19 = scmp.eq.s32.totalorder %s18, 0
      %s21 = sadd.s32 %s20, 1
      %s22 = scalar_select %p19, %s20, %s21
      %p25 = pneg %p19
      %p26 = scmp.eq.s32.totalorder %s10, 1
      %p27 = por %p25, %p26
      %p28 = scmp.ne.s32.totalorder %s20, %s23
      %p29 = scmp.eq.s32.totalorder %s10, 0
      %p30 = por %p28, %p29
      %p31 = scmp.ne.s32.totalorder %s20, %s23
      %p32 = scmp.eq.s32.totalorder %s15, 1
      %p33 = por %p31, %p32
      %p34 = scmp.ne.s32.totalorder %s23, %s24
      %p35 = scmp.eq.s32.totalorder %s15, 0
      %p36 = por %p34, %p35
      %p37 = scmp.ne.s32.totalorder %s23, %s24
      %p38 = scmp.eq.s32.totalorder %s16, 1
      %p39 = por %p37, %p38
      %p41 = scmp.ne.s32.totalorder %s24, %s40
      %p42 = scmp.eq.s32.totalorder %s16, 0
      %p43 = por %p41, %p42
      %s44 = ssub.s32 %s10, %s17
      %p45 = scmp.eq.s32.totalorder %s44, 0
      %s47 = sadd.s32 %s46, 1
      %s48 = scalar_select %p45, %s46, %s47
      %p51 = pneg %p45
      %p52 = scmp.eq.s32.totalorder %s10, 1
      %p53 = por %p51, %p52
      %p54 = scmp.ne.s32.totalorder %s46, %s49
      %p55 = scmp.eq.s32.totalorder %s10, 0
      %p56 = por %p54, %p55
      %p57 = scmp.ne.s32.totalorder %s46, %s49
      %p58 = scmp.eq.s32.totalorder %s15, 1
      %p59 = por %p57, %p58
      %p60 = scmp.ne.s32.totalorder %s49, %s50
      %p61 = scmp.eq.s32.totalorder %s15, 0
      %p62 = por %p60, %p61
      %p63 = scmp.ne.s32.totalorder %s49, %s50
      %p64 = scmp.eq.s32.totalorder %s16, 1
      %p65 = por %p63, %p64
      %p67 = scmp.ne.s32.totalorder %s50, %s66
      %p68 = scmp.eq.s32.totalorder %s16, 0
      %p69 = por %p67, %p68
      %p70 = scmp.le.s32.totalorder 1, %s10
      %p71 = scmp.lt.s32.totalorder %s10, 3
      %p72 = pnand %p70, %p71
      %p73 = pneg %p72
      // Predicated region
      $region9: #{tpu_custom_call.1} parent=5 // pred_check
        _
      $region10: #{tpu_custom_call.1} parent=5 // pred_check_branch
        %75 = sbr.rel (%p72) target = $region12
      $region11: #{tpu_custom_call.1} parent=5 // pred_region
        %s76 = ssub.s32 %s10, 1
      $region12: #{tpu_custom_call.1} parent=5 // pred_fallthru
        _
      %p77 = scmp.lt.s32.totalorder %s10, 2
      // Predicated region
      $region13: #{tpu_custom_call.1} parent=5 // pred_check
        %p78 = pneg %p77
      $region14: #{tpu_custom_call.1} parent=5 // pred_check_branch
        %80 = sbr.rel (%p78) target = $region16
      $region15: #{tpu_custom_call.1} parent=5 // pred_region
        // Predicated region
        $region17: #{tpu_custom_call.1} parent=15 // pred_check
          %p81 = pneg %p30
        $region18: #{tpu_custom_call.1} parent=15 // pred_check_branch
          %83 = sbr.rel (%p81) target = $region20
        $region19: #{tpu_custom_call.1} parent=15 // pred_region
          %s84 = sand.u32 %s20, 1
          %s85 = scalar_lea.sflag [#allocation3], %s84
          %s86 = sand.u32 %s20, 1
          %s87 = smul.addr %s86, 8
          %s88 = scalar_lea.vmem [#allocation2], %s87
          %s90 = ssub.s32 128, 128
          %91 = vsyncadd %s85, %s90
          %s92 = smul.addr %s10, 128
          %s93 = scalar_lea.hbm %s0, %s92
          %s95 = sshll.u32 %s88, 4
          %s96 = int_to_ptr.vmem [resolvable:$true] %s95
          %98 = dma.hbm_to_vmem [thread:$0]  %s93, 128, %s96, %s85
        $region20: #{tpu_custom_call.1} parent=15 // pred_fallthru
          _
      $region16: #{tpu_custom_call.1} parent=5 // pred_fallthru
        _
      %p99 = scmp.le.s32.totalorder 1, %s10
      %p100 = scmp.lt.s32.totalorder %s10, 3
      %p101 = pnand %p99, %p100
      %p102 = pneg %p101
      // Predicated region
      $region21: #{tpu_custom_call.1} parent=5 // pred_check
        _
      $region22: #{tpu_custom_call.1} parent=5 // pred_check_branch
        %104 = sbr.rel (%p101) target = $region24
      $region23: #{tpu_custom_call.1} parent=5 // pred_region
        %s105 = ssub.s32 %s10, 1
        %s106 = sand.u32 %s23, 1
        %s107 = scalar_lea.sflag [#allocation3], %s106
        %s108 = sand.u32 %s23, 1
        %s109 = smul.addr %s108, 8
        %s110 = scalar_lea.vmem [#allocation2], %s109
        // Predicated region
        $region25: #{tpu_custom_call.1} parent=23 // pred_check
          %p111 = pneg %p36
        $region26: #{tpu_custom_call.1} parent=23 // pred_check_branch
          %113 = sbr.rel (%p111) target = $region28
        $region27: #{tpu_custom_call.1} parent=23 // pred_region
          %114 = dma.done %s107, 128
        $region28: #{tpu_custom_call.1} parent=23 // pred_fallthru
          _
        %s115 = sand.u32 %s23, 1
        %s116 = scalar_lea.sflag [#allocation3], %s115
        %s117 = sand.u32 %s23, 1
        %s118 = smul.addr %s117, 8
        %s119 = scalar_lea.vmem [#allocation2], %s118
        %p120 = pneg %p36
        %p121 = pneg %p33
        %p122 = pneg %p62
        %p123 = pneg %p59
        %p124 = scmp.lt.s32.totalorder %s15, 1
        %s125 = scalar_select %p124, %s15, 1
        %s126 = smul.addr %s125, 10
        %s127 = smul.addr %s126, 8
        %s128 = scalar_lea.vmem %s1, %s127
        %p129 = scmp.lt.s32.totalorder %s15, 1
        %s130 = scalar_select %p129, %s15, 1
        %s131 = smul.addr %s130, 10
        %s132 = smul.addr %s131, 8
        %s133 = scalar_lea.vmem %s1, %s132
        %v134 = vlaneseq
        %v135 = vshrl.u32 %v134, 7
        %v136 = vadd.s32 %v135, 8
        %v137 = vlaneseq
        %v138 = vand.u32 %v137, 127
        %v139 = vmul.u32 %v138, 4
        %vm140 = vcmp.lt.s32.totalorder %v139, 14
        %v141 = vsel %vm140, %v139, 14
        %vm142 = vcmp.eq.s32.totalorder %v135, %v141
        %vm143 = vcmp.eq.s32.totalorder %v136, %v141
        %v144 = vsel %vm142, 1, 0
        %v145 = vsel %vm143, 1, 0
        %v146 = vcvt.s32.f32 %v144
        %v147 = vcvt.s32.f32 %v145
        %vm148 = vcmp.ge.s32.totalorder %v135, %v139
        %vm149 = vcmp.ge.s32.totalorder %v136, %v139
        %v150 = vadd.s32 %v139, 2
        %vm151 = vcmp.le.s32.totalorder %v135, %v150
        %vm152 = vcmp.le.s32.totalorder %v136, %v150
        %vm153 = vmand %vm148, %vm151
        %vm154 = vmand %vm149, %vm152
        %v155 = vsel %vm153, 1, 0
        %v156 = vsel %vm154, 1, 0
        %v157 = vcvt.s32.f32 %v155
        %v158 = vcvt.s32.f32 %v156
        %v159 = vmul.u32 %v135, 4
        %vm160 = vcmp.ge.s32.totalorder %v138, %v159
        %v161 = vadd.s32 %v159, 2
        %vm162 = vcmp.le.s32.totalorder %v138, %v161
        %vm163 = vmand %vm160, %vm162
        %v164 = vsel %vm163, 1, 0
        %v165 = vcvt.s32.f32 %v164
        %v166 = vld [vmem:[%s110] sm:$0xff]
        %vm167 = vcmask 121856
        %v169 = vsel %vm167, %v166, 0
        %vm171 = vcmask 1046528
        %v173 = vsel %vm171, %v147, 0
        %175 = vmatprep.subr.mxu0 0.0
        %176 = vmatpush1.msra.mxu0 0.0
        %177 = vmatprep.subr.mxu0 0.0
        %178 = vmatpush1.msra.mxu0 0.0
        %179 = vmatprep.subr.mxu0 0.0
        %180 = vmatpush1.msra.mxu0 0.0
        %181 = vmatprep.subr.mxu0 0.0
        %182 = vmatpush1.msra.mxu0 0.0
        %183 = vmatprep.subr.mxu0 0.0
        %184 = vmatpush1.msra.mxu0 0.0
        %185 = vmatprep.subr.mxu0 0.0
        %186 = vmatpush1.msra.mxu0 0.0
        %187 = vmatprep.subr.mxu0 0.0
        %188 = vmatpush1.msra.mxu0 0.0
        %189 = vmatprep.subr.mxu0 0.0
        %190 = vmatpush1.msra.mxu0 0.0
        %191 = vmatprep.subr.mxu0 0.0
        %192 = vmatpush1.msra.mxu0 0.0
        %193 = vmatprep.subr.mxu0 0.0
        %194 = vmatpush1.msra.mxu0 0.0
        %195 = vmatprep.subr.mxu0 0.0
        %196 = vmatpush1.msra.mxu0 0.0
        %197 = vmatprep.subr.mxu0 0.0
        %198 = vmatpush1.msra.mxu0 0.0
        %199 = vmatprep.subr.mxu0 0.0
        %200 = vmatpush1.msra.mxu0 0.0
        %201 = vmatprep.subr.mxu0 0.0
        %202 = vmatpush1.msra.mxu0 0.0
        %203 = vmatprep.subr.mxu0 0.0
        %204 = vmatpush1.msra.mxu0 %v173
        %205 = vmatprep.subr.mxu0 0.0
        %206 = vmatpush1.msra.mxu0 %v146
        %207 = vmatprep.subr.mxu0 0.0
        %208 = vmatpush2.msra.mxu0 0.0
        %209 = vmatprep.subr.mxu0 0.0
        %210 = vmatpush2.msra.mxu0 0.0
        %211 = vmatprep.subr.mxu0 0.0
        %212 = vmatpush2.msra.mxu0 0.0
        %213 = vmatprep.subr.mxu0 0.0
        %214 = vmatpush2.msra.mxu0 0.0
        %215 = vmatprep.subr.mxu0 0.0
        %216 = vmatpush2.msra.mxu0 0.0
        %217 = vmatprep.subr.mxu0 0.0
        %218 = vmatpush2.msra.mxu0 0.0
        %219 = vmatprep.subr.mxu0 0.0
        %220 = vmatpush2.msra.mxu0 0.0
        %221 = vmatprep.subr.mxu0 0.0
        %222 = vmatpush2.msra.mxu0 0.0
        %223 = vmatprep.subr.mxu0 0.0
        %224 = vmatpush2.msra.mxu0 0.0
        %225 = vmatprep.subr.mxu0 0.0
        %226 = vmatpush2.msra.mxu0 0.0
        %227 = vmatprep.subr.mxu0 0.0
        %228 = vmatpush2.msra.mxu0 0.0
        %229 = vmatprep.subr.mxu0 0.0
        %230 = vmatpush2.msra.mxu0 0.0
        %231 = vmatprep.subr.mxu0 0.0
        %232 = vmatpush2.msra.mxu0 0.0
        %233 = vmatprep.subr.mxu0 0.0
        %234 = vmatpush2.msra.mxu0 0.0
        %235 = vmatprep.subr.mxu0 0.0
        %236 = vmatpush2.msra.mxu0 0.0
        %237 = vmatprep.subr.mxu0 0.0
        %238 = vmatpush2.msra.mxu0 0.0
        %239 = vmatprep.mubr.f32.mxu0 0.0
        %240 = vmatmul.mubr.f32.gmra.mxu0 %v169
        %v241 = vpop.f32.mrf.mxu0
        %v242 = vadd.f32 0.0, %v241
        %v243 = vpop.f32.mrf.mxu0
        %244 = vdwg.mxu0
        %245 = vrot.lane.b32.xlu0 %v166, 1
        %v246 = vpop.permute.xlu0 %245
        %v248 = vsub.f32 %v166, %v246
        %v249 = vadd.f32 %v166, %v246
        %v250 = vmul.f32 %v249, 0.5
        %vm251 = vcmask 31744
        %v253 = vsel %vm251, %v242, 0
        %vm255 = vcmask 1043456
        %v257 = vsel %vm255, %v165, 0
        %259 = vmatprep.subr.mxu0 0.0
        %260 = vmatpush1.msra.mxu0 0.0
        %261 = vmatprep.subr.mxu0 0.0
        %262 = vmatpush1.msra.mxu0 0.0
        %263 = vmatprep.subr.mxu0 0.0
        %264 = vmatpush1.msra.mxu0 0.0
        %265 = vmatprep.subr.mxu0 0.0
        %266 = vmatpush1.msra.mxu0 0.0
        %267 = vmatprep.subr.mxu0 0.0
        %268 = vmatpush1.msra.mxu0 0.0
        %269 = vmatprep.subr.mxu0 0.0
        %270 = vmatpush1.msra.mxu0 0.0
        %271 = vmatprep.subr.mxu0 0.0
        %272 = vmatpush1.msra.mxu0 0.0
        %273 = vmatprep.subr.mxu0 0.0
        %274 = vmatpush1.msra.mxu0 0.0
        %275 = vmatprep.subr.mxu0 0.0
        %276 = vmatpush1.msra.mxu0 0.0
        %277 = vmatprep.subr.mxu0 0.0
        %278 = vmatpush1.msra.mxu0 0.0
        %279 = vmatprep.subr.mxu0 0.0
        %280 = vmatpush1.msra.mxu0 0.0
        %281 = vmatprep.subr.mxu0 0.0
        %282 = vmatpush1.msra.mxu0 0.0
        %283 = vmatprep.subr.mxu0 0.0
        %284 = vmatpush1.msra.mxu0 0.0
        %285 = vmatprep.subr.mxu0 0.0
        %286 = vmatpush1.msra.mxu0 0.0
        %287 = vmatprep.subr.mxu0 0.0
        %288 = vmatpush1.msra.mxu0 0.0
        %289 = vmatprep.subr.mxu0 0.0
        %290 = vmatpush1.msra.mxu0 %v257
        %291 = vmatprep.subr.mxu0 0.0
        %292 = vmatpush2.msra.mxu0 0.0
        %293 = vmatprep.subr.mxu0 0.0
        %294 = vmatpush2.msra.mxu0 0.0
        %295 = vmatprep.subr.mxu0 0.0
        %296 = vmatpush2.msra.mxu0 0.0
        %297 = vmatprep.subr.mxu0 0.0
        %298 = vmatpush2.msra.mxu0 0.0
        %299 = vmatprep.subr.mxu0 0.0
        %300 = vmatpush2.msra.mxu0 0.0
        %301 = vmatprep.subr.mxu0 0.0
        %302 = vmatpush2.msra.mxu0 0.0
        %303 = vmatprep.subr.mxu0 0.0
        %304 = vmatpush2.msra.mxu0 0.0
        %305 = vmatprep.subr.mxu0 0.0
        %306 = vmatpush2.msra.mxu0 0.0
        %307 = vmatprep.subr.mxu0 0.0
        %308 = vmatpush2.msra.mxu0 0.0
        %309 = vmatprep.subr.mxu0 0.0
        %310 = vmatpush2.msra.mxu0 0.0
        %311 = vmatprep.subr.mxu0 0.0
        %312 = vmatpush2.msra.mxu0 0.0
        %313 = vmatprep.subr.mxu0 0.0
        %314 = vmatpush2.msra.mxu0 0.0
        %315 = vmatprep.subr.mxu0 0.0
        %316 = vmatpush2.msra.mxu0 0.0
        %317 = vmatprep.subr.mxu0 0.0
        %318 = vmatpush2.msra.mxu0 0.0
        %319 = vmatprep.subr.mxu0 0.0
        %320 = vmatpush2.msra.mxu0 0.0
        %321 = vmatprep.subr.mxu0 0.0
        %322 = vmatpush2.msra.mxu0 0.0
        %323 = vmatprep.mubr.f32.mxu0 0.0
        %324 = vmatmul.mubr.f32.gmra.mxu0 %v253
        %v325 = vpop.f32.mrf.mxu0
        %v326 = vadd.f32 0.0, %v325
        %v327 = vpop.f32.mrf.mxu0
        %328 = vdwg.mxu0
        %330 = vrot.lane.b32.xlu0 %v326, 1
        %v331 = vpop.permute.xlu0 %330
        %v333 = vsub.f32 %v250, %v331
        %v334 = vlaneseq
        %v335 = vshrl.u32 %v334, 7
        %v336 = vsub.s32 0, %v335
        %v337 = vrot.slane %v333, %v336
        %v338 = vmul.f32 %v337, %v248
        %v339 = vlaneseq
        %v340 = vshrl.u32 %v339, 7
        %v341 = vsub.s32 1, %v340
        %v342 = vrot.slane %v333, %v341
        %v343 = vmul.f32 %v342, %v248
        %v344 = vlaneseq
        %v345 = vshrl.u32 %v344, 7
        %v346 = vsub.s32 2, %v345
        %v347 = vrot.slane %v333, %v346
        %v348 = vmul.f32 %v347, %v248
        %v349 = vlaneseq
        %v350 = vshrl.u32 %v349, 7
        %v351 = vsub.s32 3, %v350
        %v352 = vrot.slane %v333, %v351
        %v353 = vmul.f32 %v352, %v248
        %v354 = vlaneseq
        %v355 = vshrl.u32 %v354, 7
        %v356 = vsub.s32 4, %v355
        %v357 = vrot.slane %v333, %v356
        %v358 = vmul.f32 %v357, %v248
        %v359 = vlaneseq
        %v360 = vshrl.u32 %v359, 7
        %v361 = vsub.s32 5, %v360
        %v362 = vrot.slane %v333, %v361
        %v363 = vmul.f32 %v362, %v248
        %v364 = vlaneseq
        %v365 = vshrl.u32 %v364, 7
        %v366 = vsub.s32 6, %v365
        %v367 = vrot.slane %v333, %v366
        %v368 = vmul.f32 %v367, %v248
        %v369 = vlaneseq
        %v370 = vshrl.u32 %v369, 7
        %v371 = vsub.s32 7, %v370
        %v372 = vrot.slane %v333, %v371
        %v373 = vmul.f32 %v372, %v248
        %383 = vrot.lane.b32.xlu0 %v248, 127
        %v384 = vpop.permute.xlu0 %383
        %385 = vrot.lane.b32.xlu0 %v338, 127
        %v386 = vpop.permute.xlu0 %385
        %387 = vrot.lane.b32.xlu0 %v343, 127
        %v388 = vpop.permute.xlu0 %387
        %389 = vrot.lane.b32.xlu0 %v348, 127
        %v390 = vpop.permute.xlu0 %389
        %391 = vrot.lane.b32.xlu0 %v353, 127
        %v392 = vpop.permute.xlu0 %391
        %393 = vrot.lane.b32.xlu0 %v358, 127
        %v394 = vpop.permute.xlu0 %393
        %395 = vrot.lane.b32.xlu0 %v363, 127
        %v396 = vpop.permute.xlu0 %395
        %397 = vrot.lane.b32.xlu0 %v368, 127
        %v398 = vpop.permute.xlu0 %397
        %399 = vrot.lane.b32.xlu0 %v373, 127
        %v400 = vpop.permute.xlu0 %399
        %vm401 = vcmask 113664
        %v402 = vsel %vm401, %v384, 0
        %v404 = vsel %vm401, %v386, 0
        %v406 = vsel %vm401, %v388, 0
        %v408 = vsel %vm401, %v390, 0
        %v410 = vsel %vm401, %v392, 0
        %v412 = vsel %vm401, %v394, 0
        %v414 = vsel %vm401, %v396, 0
        %v416 = vsel %vm401, %v398, 0
        %v418 = vsel %vm401, %v400, 0
        %vm420 = vcmask 1045504
        %v422 = vsel %vm420, %v158, 0
        %424 = vmatprep.subr.mxu0 0.0
        %425 = vmatpush1.msra.mxu0 0.0
        %426 = vmatprep.subr.mxu0 0.0
        %427 = vmatpush1.msra.mxu0 0.0
        %428 = vmatprep.subr.mxu0 0.0
        %429 = vmatpush1.msra.mxu0 0.0
        %430 = vmatprep.subr.mxu0 0.0
        %431 = vmatpush1.msra.mxu0 0.0
        %432 = vmatprep.subr.mxu0 0.0
        %433 = vmatpush1.msra.mxu0 0.0
        %434 = vmatprep.subr.mxu0 0.0
        %435 = vmatpush1.msra.mxu0 0.0
        %436 = vmatprep.subr.mxu0 0.0
        %437 = vmatpush1.msra.mxu0 0.0
        %438 = vmatprep.subr.mxu0 0.0
        %439 = vmatpush1.msra.mxu0 0.0
        %440 = vmatprep.subr.mxu0 0.0
        %441 = vmatpush1.msra.mxu0 0.0
        %442 = vmatprep.subr.mxu0 0.0
        %443 = vmatpush1.msra.mxu0 0.0
        %444 = vmatprep.subr.mxu0 0.0
        %445 = vmatpush1.msra.mxu0 0.0
        %446 = vmatprep.subr.mxu0 0.0
        %447 = vmatpush1.msra.mxu0 0.0
        %448 = vmatprep.subr.mxu0 0.0
        %449 = vmatpush1.msra.mxu0 0.0
        %450 = vmatprep.subr.mxu0 0.0
        %451 = vmatpush1.msra.mxu0 0.0
        %452 = vmatprep.subr.mxu0 0.0
        %453 = vmatpush1.msra.mxu0 %v422
        %454 = vmatprep.subr.mxu0 0.0
        %455 = vmatpush1.msra.mxu0 %v157
        %456 = vmatprep.subr.mxu0 0.0
        %457 = vmatpush2.msra.mxu0 0.0
        %458 = vmatprep.subr.mxu0 0.0
        %459 = vmatpush2.msra.mxu0 0.0
        %460 = vmatprep.subr.mxu0 0.0
        %461 = vmatpush2.msra.mxu0 0.0
        %462 = vmatprep.subr.mxu0 0.0
        %463 = vmatpush2.msra.mxu0 0.0
        %464 = vmatprep.subr.mxu0 0.0
        %465 = vmatpush2.msra.mxu0 0.0
        %466 = vmatprep.subr.mxu0 0.0
        %467 = vmatpush2.msra.mxu0 0.0
        %468 = vmatprep.subr.mxu0 0.0
        %469 = vmatpush2.msra.mxu0 0.0
        %470 = vmatprep.subr.mxu0 0.0
        %471 = vmatpush2.msra.mxu0 0.0
        %472 = vmatprep.subr.mxu0 0.0
        %473 = vmatpush2.msra.mxu0 0.0
        %474 = vmatprep.subr.mxu0 0.0
        %475 = vmatpush2.msra.mxu0 0.0
        %476 = vmatprep.subr.mxu0 0.0
        %477 = vmatpush2.msra.mxu0 0.0
        %478 = vmatprep.subr.mxu0 0.0
        %479 = vmatpush2.msra.mxu0 0.0
        %480 = vmatprep.subr.mxu0 0.0
        %481 = vmatpush2.msra.mxu0 0.0
        %482 = vmatprep.subr.mxu0 0.0
        %483 = vmatpush2.msra.mxu0 0.0
        %484 = vmatprep.subr.mxu0 0.0
        %485 = vmatpush2.msra.mxu0 0.0
        %486 = vmatprep.subr.mxu0 0.0
        %487 = vmatpush2.msra.mxu0 0.0
        %488 = vmatprep.mubr.f32.mxu0 0.0
        %489 = vmatmul.mubr.f32.gmra.mxu0 %v402
        %v490 = vpop.f32.mrf.mxu0
        %v491 = vadd.f32 0.0, %v490
        %v492 = vpop.f32.mrf.mxu0
        %493 = vmatprep.mubr.f32.mxu0 0.0
        %494 = vmatmul.mubr.f32.gmra.mxu0 %v404
        %v495 = vpop.f32.mrf.mxu0
        %v496 = vadd.f32 0.0, %v495
        %v497 = vpop.f32.mrf.mxu0
        %498 = vmatprep.mubr.f32.mxu0 0.0
        %499 = vmatmul.mubr.f32.gmra.mxu0 %v406
        %v500 = vpop.f32.mrf.mxu0
        %v501 = vadd.f32 0.0, %v500
        %v502 = vpop.f32.mrf.mxu0
        %503 = vmatprep.mubr.f32.mxu0 0.0
        %504 = vmatmul.mubr.f32.gmra.mxu0 %v408
        %v505 = vpop.f32.mrf.mxu0
        %v506 = vadd.f32 0.0, %v505
        %v507 = vpop.f32.mrf.mxu0
        %508 = vmatprep.mubr.f32.mxu0 0.0
        %509 = vmatmul.mubr.f32.gmra.mxu0 %v410
        %v510 = vpop.f32.mrf.mxu0
        %v511 = vadd.f32 0.0, %v510
        %v512 = vpop.f32.mrf.mxu0
        %513 = vmatprep.mubr.f32.mxu0 0.0
        %514 = vmatmul.mubr.f32.gmra.mxu0 %v412
        %v515 = vpop.f32.mrf.mxu0
        %v516 = vadd.f32 0.0, %v515
        %v517 = vpop.f32.mrf.mxu0
        %518 = vmatprep.mubr.f32.mxu0 0.0
        %519 = vmatmul.mubr.f32.gmra.mxu0 %v414
        %v520 = vpop.f32.mrf.mxu0
        %v521 = vadd.f32 0.0, %v520
        %v522 = vpop.f32.mrf.mxu0
        %523 = vmatprep.mubr.f32.mxu0 0.0
        %524 = vmatmul.mubr.f32.gmra.mxu0 %v416
        %v525 = vpop.f32.mrf.mxu0
        %v526 = vadd.f32 0.0, %v525
        %v527 = vpop.f32.mrf.mxu0
        %528 = vmatprep.mubr.f32.mxu0 0.0
        %529 = vmatmul.mubr.f32.gmra.mxu0 %v418
        %v530 = vpop.f32.mrf.mxu0
        %v531 = vadd.f32 0.0, %v530
        %v532 = vpop.f32.mrf.mxu0
        %533 = vdwg.mxu0
        %534 = vst.msk [vmem:[%s133] sm:$0xff] %vm251, %v491
        %535 = vst.msk [vmem:[%s133 + $0x8] sm:$0xff] %vm251, %v496
        %536 = vst.msk [vmem:[%s133 + $0x10] sm:$0xff] %vm251, %v501
        %537 = vst.msk [vmem:[%s133 + $0x18] sm:$0xff] %vm251, %v506
        %538 = vst.msk [vmem:[%s133 + $0x20] sm:$0xff] %vm251, %v511
        %539 = vst.msk [vmem:[%s133 + $0x28] sm:$0xff] %vm251, %v516
        %540 = vst.msk [vmem:[%s133 + $0x30] sm:$0xff] %vm251, %v521
        %541 = vst.msk [vmem:[%s133 + $0x38] sm:$0xff] %vm251, %v526
        %542 = vst.msk [vmem:[%s133 + $0x40] sm:$0xff] %vm251, %v531
        %543 = vst.msk [vmem:[%s133 + $0x48] sm:$0xff] %vm251, %v242
        %p544 = scmp.lt.s32.totalorder %s15, 1
        %s545 = scalar_select %p544, %s15, 1
        %s546 = smul.addr %s545, 10
        %s547 = smul.addr %s546, 8
        %s548 = scalar_lea.vmem %s1, %s547
        // Predicated region
        $region29: #{tpu_custom_call.1} parent=23 // pred_check
          %p549 = pneg %p59
        $region30: #{tpu_custom_call.1} parent=23 // pred_check_branch
          %551 = sbr.rel (%p549) target = $region32
        $region31: #{tpu_custom_call.1} parent=23 // pred_region
          _
        $region32: #{tpu_custom_call.1} parent=23 // pred_fallthru
          _
      $region24: #{tpu_custom_call.1} parent=5 // pred_fallthru
        _
      %p552 = scmp.le.s32.totalorder 2, %s10
      // Predicated region
      $region33: #{tpu_custom_call.1} parent=5 // pred_check
        %p553 = pneg %p552
      $region34: #{tpu_custom_call.1} parent=5 // pred_check_branch
        %555 = sbr.rel (%p553) target = $region36
      $region35: #{tpu_custom_call.1} parent=5 // pred_region
        %s556 = ssub.s32 %s10, 2
        // Predicated region
        $region37: #{tpu_custom_call.1} parent=35 // pred_check
          %p557 = pneg %p65
        $region38: #{tpu_custom_call.1} parent=35 // pred_check_branch
          %559 = sbr.rel (%p557) target = $region40
        $region39: #{tpu_custom_call.1} parent=35 // pred_region
          %p560 = scmp.lt.s32.totalorder %s16, 1
          %s561 = scalar_select %p560, %s16, 1
          %s562 = smul.addr %s561, 10
          %s563 = smul.addr %s562, 8
          %s564 = scalar_lea.vmem %s1, %s563
        $region40: #{tpu_custom_call.1} parent=35 // pred_fallthru
          _
      $region36: #{tpu_custom_call.1} parent=5 // pred_fallthru
        _
    $region6: #{tpu_custom_call.1} parent=1 // loop_footer
      %s14 = sadd.s32 1, %s10
    $region7: #{tpu_custom_call.1} parent=1 // loop_footer_branch
      %9 = sbr.rel target = $region3
    $region8: #{tpu_custom_call.1} parent=1 // loop_exit
      _
    %565 = vsyncpa [#allocation3], 1
    %s566 = scalar_lea.sflag [#allocation3], 1
    %567 = vsyncpa %s566, 1

</llo_original>
